<compile_context>
chip_gen: v5e
topology: v5e:2x2
jax: 0.10.0
libtpu: 0.0.40
codegen_flags: <defaults>
</compile_context>

<pallas_src>
import functools
import math

import jax
import jax.numpy as jnp
from jax.experimental import pallas as pl
from jax.experimental.pallas import tpu as pltpu


def _gelu_exact(x):
    # PyTorch nn.GELU() default is the exact (erf) formulation.
    return 0.5 * x * (1.0 + jax.lax.erf(x * (1.0 / math.sqrt(2.0))))


# --------------------------------------------------------------------------
# Kernel
# --------------------------------------------------------------------------
def _gating_kernel(x_ref, w1_ref, b1_ref, w2k_ref, b2k_ref,
                   w3_ref, b3_ref, w4_ref, b4_ref, o_ref,
                   *, seq_len, seq_tile, precision):
    sg = pl.program_id(1)                       # seq-tile index (reduction axis)

    # Zero the per-batch-block accumulator (the output ref is resident across
    # the whole seq axis because its block index does not depend on sg).
    @pl.when(sg == 0)
    def _():
        o_ref[...] = jnp.zeros_like(o_ref)

    bb, ts, E = x_ref.shape
    K = o_ref.shape[-1]
    cdt = x_ref.dtype                           # compute dtype (bf16 or f32)

    x = x_ref[...].reshape(bb * ts, E)          # (rows, E)

    # query_projection layer 1 + GELU (bias add / GELU in f32).
    h1 = jnp.dot(x, w1_ref[...],
                 preferred_element_type=jnp.float32, precision=precision)
    h1 = _gelu_exact(h1 + b1_ref[...])

    # Fused: (query_projection layer 2) @ block-diag(lora_keys) * 1/sqrt(D).
    sc = jnp.dot(h1.astype(cdt), w2k_ref[...],
                 preferred_element_type=jnp.float32, precision=precision)
    sc = sc + b2k_ref[...]                      # (rows, H*K)

    # concat_projection layer 1 + GELU.
    h2 = jnp.dot(sc.astype(cdt), w3_ref[...],
                 preferred_element_type=jnp.float32, precision=precision)
    h2 = _gelu_exact(h2 + b3_ref[...])

    # concat_projection layer 2.
    lw = jnp.dot(h2.astype(cdt), w4_ref[...],
                 preferred_element_type=jnp.float32, precision=precision)
    lw = lw + b4_ref[...]                       # (rows, K)

    # Partial seq-sum for the mean (per batch row inside this batch block).
    lw3 = lw.reshape(bb, ts, K)
    if seq_len % seq_tile == 0:
        partial = jnp.sum(lw3, axis=1)          # (bb, K)
    else:
        # Mask rows past the real sequence length (last partial seq tile).
        t_idx = jax.lax.broadcasted_iota(jnp.int32, (1, ts, 1), 1)
        valid = (sg * seq_tile + t_idx) < seq_len
        partial = jnp.sum(jnp.where(valid, lw3, 0.0), axis=1)

    o_ref[...] += partial

    # Finalize: mean (divide by S) + softmax over num_loras.
    @pl.when(sg == pl.num_programs(1) - 1)
    def _():
        g = o_ref[...] * (1.0 / seq_len)
        m = jnp.max(g, axis=-1, keepdims=True)
        e = jnp.exp(g - m)
        o_ref[...] = e / jnp.sum(e, axis=-1, keepdims=True)


# --------------------------------------------------------------------------
# Wrapper / parameter preparation (called once, not per forward)
# --------------------------------------------------------------------------
def prepare_params(raw, compute_dtype=jnp.bfloat16):
    """Fold w2 @ block_diag(keys) * 1/sqrt(D) into a single weight and cast."""
    H, D, K = raw["num_heads"], raw["head_dim"], raw["num_loras"]
    T = H * D
    inv_sqrt_d = 1.0 / math.sqrt(D)
    hi = jax.lax.Precision.HIGHEST

    keys = raw["lora_keys"]                                     # (K, H, D)
    w2r = raw["w2"].reshape(2 * T, H, D)
    w2k = (jnp.einsum("ihd,khd->ihk", w2r, keys, precision=hi)
           * inv_sqrt_d).reshape(2 * T, H * K)
    b2r = raw["b2"].reshape(1, H, D)
    b2k = (jnp.einsum("xhd,khd->xhk", b2r, keys, precision=hi)
           * inv_sqrt_d).reshape(1, H * K)

    cd = compute_dtype
    return dict(
        num_heads=H, head_dim=D, num_loras=K, compute_dtype=cd,
        w1=raw["w1"].astype(cd),  b1=raw["b1"].astype(jnp.float32),
        w2k=w2k.astype(cd),       b2k=b2k.astype(jnp.float32),
        w3=raw["w3"].astype(cd),  b3=raw["b3"].astype(jnp.float32),
        w4=raw["w4"].astype(cd),  b4=raw["b4"].astype(jnp.float32),
    )


def _choose_tiles(B, S):
    # Batch block: 8 rows (sublane aligned) when it divides B, else whole B.
    bb = 8 if (B >= 8 and B % 8 == 0) else B
    # Target ~512 activation rows per grid step.
    ts_target = max(8, 512 // bb)
    ts = S if S <= ts_target else (ts_target // 8) * 8
    return bb, ts


def _vmem_budget(prep, bb, ts, E, K):
    w_bytes = sum(int(prep[k].size) * prep[k].dtype.itemsize
                  for k in ("w1", "b1", "w2k", "b2k", "w3", "b3", "w4", "b4"))
    x_bytes = 2 * bb * ts * E * jnp.dtype(prep["compute_dtype"]).itemsize  # dbl-buffered
    o_bytes = 2 * bb * K * 4
    total = 3 * (w_bytes + x_bytes + o_bytes)       # headroom for compiler scratch
    return int(min(max(total, 16 << 20), 48 << 20))


def simplified_gating_forward(query, prep):
    """query: (B, S, E); prep: output of prepare_params. Returns (B, num_loras) f32."""
    B, S, E = query.shape
    K = prep["num_loras"]
    cd = prep["compute_dtype"]
    bb, ts = _choose_tiles(B, S)
    grid = (pl.cdiv(B, bb), pl.cdiv(S, ts))

    # f32 path: bit-faithful MXU passes; bf16 path: fast default.
    precision = (jax.lax.Precision.HIGHEST
                 if jnp.dtype(cd) == jnp.dtype(jnp.float32)
                 else jax.lax.Precision.DEFAULT)

    kernel = functools.partial(_gating_kernel, seq_len=S, seq_tile=ts,
                               precision=precision)

    def full_spec(arr):   # whole-array resident weight/bias
        return pl.BlockSpec(arr.shape, lambda bg, sg: (0, 0))

    out = pl.pallas_call(
        kernel,
        out_shape=jax.ShapeDtypeStruct((B, K), jnp.float32),
        grid_spec=pltpu.PrefetchScalarGridSpec(
            num_scalar_prefetch=0,
            grid=grid,
            in_specs=[
                pl.BlockSpec((bb, ts, E), lambda bg, sg: (bg, sg, 0)),
                full_spec(prep["w1"]),  full_spec(prep["b1"]),
                full_spec(prep["w2k"]), full_spec(prep["b2k"]),
                full_spec(prep["w3"]),  full_spec(prep["b3"]),
                full_spec(prep["w4"]),  full_spec(prep["b4"]),
            ],
            out_specs=pl.BlockSpec((bb, K), lambda bg, sg: (bg, 0)),
        ),
        compiler_params=pltpu.CompilerParams(
            dimension_semantics=("parallel", "arbitrary"),
            vmem_limit_bytes=_vmem_budget(prep, bb, ts, E, K),
        ),
    )(
        query.astype(cd),
        prep["w1"], prep["b1"], prep["w2k"], prep["b2k"],
        prep["w3"], prep["b3"], prep["w4"], prep["b4"],
    )
    return out


# --------------------------------------------------------------------------
# Init + pure-JAX reference (mirrors the PyTorch module)
# --------------------------------------------------------------------------
def init_params(key, embed_dim, num_heads, head_dim, num_loras):
    T = num_heads * head_dim
    HK = num_heads * num_loras
    ks = jax.random.split(key, 5)

    def lin(k, fan_in, fan_out):
        bound = 1.0 / math.sqrt(fan_in)
        kw, kb = jax.random.split(k)
        w = jax.random.uniform(kw, (fan_in, fan_out), jnp.float32, -bound, bound)
        b = jax.random.uniform(kb, (1, fan_out), jnp.float32, -bound, bound)
        return w, b

    w1, b1 = lin(ks[0], embed_dim, 2 * T)
    w2, b2 = lin(ks[1], 2 * T, T)
    w3, b3 = lin(ks[2], HK, 2 * HK)
    w4, b4 = lin(ks[3], 2 * HK, num_loras)
    # Synthetic stand-in for advancedLoRAPool(only_output_key=True).
    lora_keys = jax.random.normal(ks[4], (num_loras, num_heads, head_dim), jnp.float32)

    return dict(num_heads=num_heads, head_dim=head_dim, num_loras=num_loras,
                w1=w1, b1=b1, w2=w2, b2=b2, w3=w3, b3=b3, w4=w4, b4=b4,
                lora_keys=lora_keys)


def reference_forward(query, raw):
    B, S, E = query.shape
    H, D, K = raw["num_heads"], raw["head_dim"], raw["num_loras"]
    q = _gelu_exact(query @ raw["w1"] + raw["b1"])
    q = q @ raw["w2"] + raw["b2"]
    q = q.reshape(B, S, H, D)
    scores = jnp.einsum("bqhd,khd->bqhk", q, raw["lora_keys"]) / math.sqrt(D)
    scores = scores.reshape(B, S, H * K)
    lw = _gelu_exact(scores @ raw["w3"] + raw["b3"])
    lw = lw @ raw["w4"] + raw["b4"]
    g = lw.mean(axis=1)
    return jax.nn.softmax(g, axis=-1)


if __name__ == "__main__":
    B, S = 2, 8
    embed_dim, num_heads, head_dim, num_loras = 32, 4, 8, 4

    key = jax.random.PRNGKey(0)
    kq, kp = jax.random.split(key)
    query = jax.random.normal(kq, (B, S, embed_dim), jnp.float32)
    raw = init_params(kp, embed_dim, num_heads, head_dim, num_loras)

    with jax.default_matmul_precision("highest"):
        ref = reference_forward(query, raw)

    # f32 compute path — tight check against the reference.
    prep32 = prepare_params(raw, compute_dtype=jnp.float32)
    out32 = jax.block_until_ready(simplified_gating_forward(query, prep32))
    assert out32.shape == (B, num_loras)
    assert jnp.allclose(out32, ref, atol=1e-5, rtol=1e-5), (out32, ref)

    # bf16 compute path (default / performance path) — relaxed tolerance.
    prep16 = prepare_params(raw, compute_dtype=jnp.bfloat16)
    out16 = jax.block_until_ready(simplified_gating_forward(query, prep16))
    assert out16.shape == (B, num_loras)
    assert jnp.allclose(out16, ref, atol=2e-2, rtol=2e-2), (out16, ref)

    print("KERNEL_OK")
</pallas_src>

<mosaic_0001>
module attributes {stable_mosaic.version = 11 : i64} {
  func.func @_gating_kernel(%arg0: i32, %arg1: i32, %arg2: memref<2x8x32xf32, #tpu.memory_space<vmem>>, %arg3: memref<32x64xf32, #tpu.memory_space<vmem>>, %arg4: memref<1x64xf32, #tpu.memory_space<vmem>>, %arg5: memref<64x16xf32, #tpu.memory_space<vmem>>, %arg6: memref<1x16xf32, #tpu.memory_space<vmem>>, %arg7: memref<16x32xf32, #tpu.memory_space<vmem>>, %arg8: memref<1x32xf32, #tpu.memory_space<vmem>>, %arg9: memref<32x4xf32, #tpu.memory_space<vmem>>, %arg10: memref<1x4xf32, #tpu.memory_space<vmem>>, %arg11: memref<2x4xf32, #tpu.memory_space<vmem>>) attributes {dimension_semantics = [#tpu.dimension_semantics<parallel>, #tpu.dimension_semantics<arbitrary>], iteration_bounds = array<i64: 1, 1>, scalar_prefetch = 0 : i64, scratch_operands = 0 : i64, tpu.core_type = #tpu.core_type<tc>, window_params = [{transform_indices = @transform_0, window_bounds = array<i64: 2, 8, 32>}, {pipeline_mode = #tpu.pipeline_mode<synchronous>, transform_indices = @transform_1, window_bounds = array<i64: 32, 64>}, {pipeline_mode = #tpu.pipeline_mode<synchronous>, transform_indices = @transform_2, window_bounds = array<i64: 1, 64>}, {pipeline_mode = #tpu.pipeline_mode<synchronous>, transform_indices = @transform_3, window_bounds = array<i64: 64, 16>}, {pipeline_mode = #tpu.pipeline_mode<synchronous>, transform_indices = @transform_4, window_bounds = array<i64: 1, 16>}, {pipeline_mode = #tpu.pipeline_mode<synchronous>, transform_indices = @transform_5, window_bounds = array<i64: 16, 32>}, {pipeline_mode = #tpu.pipeline_mode<synchronous>, transform_indices = @transform_6, window_bounds = array<i64: 1, 32>}, {pipeline_mode = #tpu.pipeline_mode<synchronous>, transform_indices = @transform_7, window_bounds = array<i64: 32, 4>}, {pipeline_mode = #tpu.pipeline_mode<synchronous>, transform_indices = @transform_8, window_bounds = array<i64: 1, 4>}, {transform_indices = @transform_9, window_bounds = array<i64: 2, 4>}]} {
    %c0_i32 = arith.constant 0 : i32
    %0 = arith.cmpi eq, %arg1, %c0_i32 : i32
    %1 = arith.extui %0 : i1 to i32
    %c0_i32_0 = arith.constant 0 : i32
    %2 = arith.cmpi ne, %1, %c0_i32_0 : i32
    scf.if %2 {
      %cst_35 = arith.constant 0.000000e+00 : f32
      %49 = vector.broadcast %cst_35 : f32 to vector<2x4xf32>
      %c0_36 = arith.constant 0 : index
      %c0_37 = arith.constant 0 : index
      %50 = vector.load %arg11[%c0_36, %c0_37] : memref<2x4xf32, #tpu.memory_space<vmem>>, vector<2x4xf32>
      tpu.vector_store %arg11[%c0_36, %c0_37], %49 {strides = array<i32>} : memref<2x4xf32, #tpu.memory_space<vmem>>, vector<2x4xf32>,
    } else {
    }
    %c0 = arith.constant 0 : index
    %c0_1 = arith.constant 0 : index
    %c0_2 = arith.constant 0 : index
    %3 = vector.load %arg2[%c0, %c0_1, %c0_2] : memref<2x8x32xf32, #tpu.memory_space<vmem>>, vector<2x8x32xf32>
    %4 = vector.shape_cast %3 : vector<2x8x32xf32> to vector<16x32xf32>
    %c0_3 = arith.constant 0 : index
    %c0_4 = arith.constant 0 : index
    %5 = vector.load %arg3[%c0_3, %c0_4] : memref<32x64xf32, #tpu.memory_space<vmem>>, vector<32x64xf32>
    %cst = arith.constant dense<0.000000e+00> : vector<16x64xf32>
    %6 = tpu.matmul %4, %5, %cst {dimension_numbers = #tpu.dot_dimension_numbers<[1], [0], [0], [1], [0, 0, 1, 1], [], []>, precision = #tpu.contract_precision<fp32>} : vector<16x32xf32>, vector<32x64xf32>, vector<16x64xf32> -> vector<16x64xf32>
    %c0_5 = arith.constant 0 : index
    %c0_6 = arith.constant 0 : index
    %7 = vector.load %arg4[%c0_5, %c0_6] : memref<1x64xf32, #tpu.memory_space<vmem>>, vector<1x64xf32>
    %8 = vector.broadcast %7 : vector<1x64xf32> to vector<16x64xf32>
    %9 = arith.addf %6, %8 : vector<16x64xf32>
    %cst_7 = arith.constant 5.000000e-01 : f32
    %10 = vector.broadcast %cst_7 : f32 to vector<16x64xf32>
    %11 = arith.mulf %10, %9 : vector<16x64xf32>
    %cst_8 = arith.constant 0.707106769 : f32
    %12 = vector.broadcast %cst_8 : f32 to vector<16x64xf32>
    %13 = arith.mulf %9, %12 : vector<16x64xf32>
    %14 = math.erf %13 : vector<16x64xf32>
    %cst_9 = arith.constant 1.000000e+00 : f32
    %15 = vector.broadcast %cst_9 : f32 to vector<16x64xf32>
    %16 = arith.addf %15, %14 : vector<16x64xf32>
    %17 = arith.mulf %11, %16 : vector<16x64xf32>
    %c0_10 = arith.constant 0 : index
    %c0_11 = arith.constant 0 : index
    %18 = vector.load %arg5[%c0_10, %c0_11] : memref<64x16xf32, #tpu.memory_space<vmem>>, vector<64x16xf32>
    %cst_12 = arith.constant dense<0.000000e+00> : vector<16x16xf32>
    %19 = tpu.matmul %17, %18, %cst_12 {dimension_numbers = #tpu.dot_dimension_numbers<[1], [0], [0], [1], [0, 0, 1, 1], [], []>, precision = #tpu.contract_precision<fp32>} : vector<16x64xf32>, vector<64x16xf32>, vector<16x16xf32> -> vector<16x16xf32>
    %c0_13 = arith.constant 0 : index
    %c0_14 = arith.constant 0 : index
    %20 = vector.load %arg6[%c0_13, %c0_14] : memref<1x16xf32, #tpu.memory_space<vmem>>, vector<1x16xf32>
    %21 = vector.broadcast %20 : vector<1x16xf32> to vector<16x16xf32>
    %22 = arith.addf %19, %21 : vector<16x16xf32>
    %c0_15 = arith.constant 0 : index
    %c0_16 = arith.constant 0 : index
    %23 = vector.load %arg7[%c0_15, %c0_16] : memref<16x32xf32, #tpu.memory_space<vmem>>, vector<16x32xf32>
    %cst_17 = arith.constant dense<0.000000e+00> : vector<16x32xf32>
    %24 = tpu.matmul %22, %23, %cst_17 {dimension_numbers = #tpu.dot_dimension_numbers<[1], [0], [0], [1], [0, 0, 1, 1], [], []>, precision = #tpu.contract_precision<fp32>} : vector<16x16xf32>, vector<16x32xf32>, vector<16x32xf32> -> vector<16x32xf32>
    %c0_18 = arith.constant 0 : index
    %c0_19 = arith.constant 0 : index
    %25 = vector.load %arg8[%c0_18, %c0_19] : memref<1x32xf32, #tpu.memory_space<vmem>>, vector<1x32xf32>
    %26 = vector.broadcast %25 : vector<1x32xf32> to vector<16x32xf32>
    %27 = arith.addf %24, %26 : vector<16x32xf32>
    %cst_20 = arith.constant 5.000000e-01 : f32
    %28 = vector.broadcast %cst_20 : f32 to vector<16x32xf32>
    %29 = arith.mulf %28, %27 : vector<16x32xf32>
    %cst_21 = arith.constant 0.707106769 : f32
    %30 = vector.broadcast %cst_21 : f32 to vector<16x32xf32>
    %31 = arith.mulf %27, %30 : vector<16x32xf32>
    %32 = math.erf %31 : vector<16x32xf32>
    %cst_22 = arith.constant 1.000000e+00 : f32
    %33 = vector.broadcast %cst_22 : f32 to vector<16x32xf32>
    %34 = arith.addf %33, %32 : vector<16x32xf32>
    %35 = arith.mulf %29, %34 : vector<16x32xf32>
    %c0_23 = arith.constant 0 : index
    %c0_24 = arith.constant 0 : index
    %36 = vector.load %arg9[%c0_23, %c0_24] : memref<32x4xf32, #tpu.memory_space<vmem>>, vector<32x4xf32>
    %cst_25 = arith.constant dense<0.000000e+00> : vector<16x4xf32>
    %37 = tpu.matmul %35, %36, %cst_25 {dimension_numbers = #tpu.dot_dimension_numbers<[1], [0], [0], [1], [0, 0, 1, 1], [], []>, precision = #tpu.contract_precision<fp32>} : vector<16x32xf32>, vector<32x4xf32>, vector<16x4xf32> -> vector<16x4xf32>
    %c0_26 = arith.constant 0 : index
    %c0_27 = arith.constant 0 : index
    %38 = vector.load %arg10[%c0_26, %c0_27] : memref<1x4xf32, #tpu.memory_space<vmem>>, vector<1x4xf32>
    %39 = vector.broadcast %38 : vector<1x4xf32> to vector<16x4xf32>
    %40 = arith.addf %37, %39 : vector<16x4xf32>
    %41 = vector.shape_cast %40 : vector<16x4xf32> to vector<2x8x4xf32>
    %cst_28 = arith.constant dense<0.000000e+00> : vector<2x4xf32>
    %42 = vector.multi_reduction <add>, %41, %cst_28 [1] : vector<2x8x4xf32> to vector<2x4xf32>
    %c0_29 = arith.constant 0 : index
    %c0_30 = arith.constant 0 : index
    %43 = vector.load %arg11[%c0_29, %c0_30] : memref<2x4xf32, #tpu.memory_space<vmem>>, vector<2x4xf32>
    %44 = arith.addf %43, %42 : vector<2x4xf32>
    %c0_31 = arith.constant 0 : index
    %c0_32 = arith.constant 0 : index
    %45 = vector.load %arg11[%c0_31, %c0_32] : memref<2x4xf32, #tpu.memory_space<vmem>>, vector<2x4xf32>
    tpu.vector_store %arg11[%c0_31, %c0_32], %44 {strides = array<i32>} : memref<2x4xf32, #tpu.memory_space<vmem>>, vector<2x4xf32>,
    %c0_i32_33 = arith.constant 0 : i32
    %46 = arith.cmpi eq, %arg1, %c0_i32_33 : i32
    %47 = arith.extui %46 : i1 to i32
    %c0_i32_34 = arith.constant 0 : i32
    %48 = arith.cmpi ne, %47, %c0_i32_34 : i32
    scf.if %48 {
      %c0_35 = arith.constant 0 : index
      %c0_36 = arith.constant 0 : index
      %49 = vector.load %arg11[%c0_35, %c0_36] : memref<2x4xf32, #tpu.memory_space<vmem>>, vector<2x4xf32>
      %cst_37 = arith.constant 1.250000e-01 : f32
      %50 = vector.broadcast %cst_37 : f32 to vector<2x4xf32>
      %51 = arith.mulf %49, %50 : vector<2x4xf32>
      %cst_38 = arith.constant dense<0xFF800000> : vector<2xf32>
      %52 = vector.multi_reduction <maximumf>, %51, %cst_38 [1] : vector<2x4xf32> to vector<2xf32>
      %53 = vector.shape_cast %52 : vector<2xf32> to vector<2x1xf32>
      %54 = vector.broadcast %53 : vector<2x1xf32> to vector<2x4xf32>
      %55 = arith.subf %51, %54 : vector<2x4xf32>
      %56 = math.exp %55 : vector<2x4xf32>
      %cst_39 = arith.constant dense<0.000000e+00> : vector<2xf32>
      %57 = vector.multi_reduction <add>, %56, %cst_39 [1] : vector<2x4xf32> to vector<2xf32>
      %58 = vector.shape_cast %57 : vector<2xf32> to vector<2x1xf32>
      %59 = vector.broadcast %58 : vector<2x1xf32> to vector<2x4xf32>
      %60 = arith.divf %56, %59 : vector<2x4xf32>
      %c0_40 = arith.constant 0 : index
      %c0_41 = arith.constant 0 : index
      %61 = vector.load %arg11[%c0_40, %c0_41] : memref<2x4xf32, #tpu.memory_space<vmem>>, vector<2x4xf32>
      tpu.vector_store %arg11[%c0_40, %c0_41], %60 {strides = array<i32>} : memref<2x4xf32, #tpu.memory_space<vmem>>, vector<2x4xf32>,
    } else {
    }
    return
  }
  func.func @transform_0(%arg0: i32, %arg1: i32) -> (i32, i32, i32) {
    %c0_i32 = arith.constant 0 : i32
    %c0_i32_0 = arith.constant 0 : i32
    return %arg0, %arg1, %c0_i32 : i32, i32, i32
  }
  func.func @transform_1(%arg0: i32, %arg1: i32) -> (i32, i32) {
    %c0_i32 = arith.constant 0 : i32
    %c0_i32_0 = arith.constant 0 : i32
    %c0_i32_1 = arith.constant 0 : i32
    return %c0_i32, %c0_i32_0 : i32, i32
  }
  func.func @transform_2(%arg0: i32, %arg1: i32) -> (i32, i32) {
    %c0_i32 = arith.constant 0 : i32
    %c0_i32_0 = arith.constant 0 : i32
    %c0_i32_1 = arith.constant 0 : i32
    return %c0_i32, %c0_i32_0 : i32, i32
  }
  func.func @transform_3(%arg0: i32, %arg1: i32) -> (i32, i32) {
    %c0_i32 = arith.constant 0 : i32
    %c0_i32_0 = arith.constant 0 : i32
    %c0_i32_1 = arith.constant 0 : i32
    return %c0_i32, %c0_i32_0 : i32, i32
  }
  func.func @transform_4(%arg0: i32, %arg1: i32) -> (i32, i32) {
    %c0_i32 = arith.constant 0 : i32
    %c0_i32_0 = arith.constant 0 : i32
    %c0_i32_1 = arith.constant 0 : i32
    return %c0_i32, %c0_i32_0 : i32, i32
  }
  func.func @transform_5(%arg0: i32, %arg1: i32) -> (i32, i32) {
    %c0_i32 = arith.constant 0 : i32
    %c0_i32_0 = arith.constant 0 : i32
    %c0_i32_1 = arith.constant 0 : i32
    return %c0_i32, %c0_i32_0 : i32, i32
  }
  func.func @transform_6(%arg0: i32, %arg1: i32) -> (i32, i32) {
    %c0_i32 = arith.constant 0 : i32
    %c0_i32_0 = arith.constant 0 : i32
    %c0_i32_1 = arith.constant 0 : i32
    return %c0_i32, %c0_i32_0 : i32, i32
  }
  func.func @transform_7(%arg0: i32, %arg1: i32) -> (i32, i32) {
    %c0_i32 = arith.constant 0 : i32
    %c0_i32_0 = arith.constant 0 : i32
    %c0_i32_1 = arith.constant 0 : i32
    return %c0_i32, %c0_i32_0 : i32, i32
  }
  func.func @transform_8(%arg0: i32, %arg1: i32) -> (i32, i32) {
    %c0_i32 = arith.constant 0 : i32
    %c0_i32_0 = arith.constant 0 : i32
    %c0_i32_1 = arith.constant 0 : i32
    return %c0_i32, %c0_i32_0 : i32, i32
  }
  func.func @transform_9(%arg0: i32, %arg1: i32) -> (i32, i32) {
    %c0_i32 = arith.constant 0 : i32
    %c0_i32_0 = arith.constant 0 : i32
    return %arg0, %c0_i32 : i32, i32
  }
}

</mosaic_0001>

<llo_original>
// kernel: tpu_custom_call.1
$region0: #{tpu_custom_call.1}
  #allocation0 [shape = 'u32[]', space=smem, size = 0x4, offset = 0x4, fixed_abs, tag = 'smem constant byte address 0x4 - core index']
  #allocation1 [shape = 'u32[72,128]{1,0:T(1,128)}', space=vmem, size = 0x9000, scoped, tag = 'internal scratch']
  %s0 = inlined_call_operand.vmem [shape: f32[2,8,32], index: 0, kind: input, shape index: {}]
  %s1 = inlined_call_operand.vmem [shape: f32[32,64], index: 1, kind: input, shape index: {}]
  %s2 = inlined_call_operand.vmem [shape: f32[1,64], index: 2, kind: input, shape index: {}]
  %s3 = inlined_call_operand.vmem [shape: f32[64,16], index: 3, kind: input, shape index: {}]
  %s4 = inlined_call_operand.vmem [shape: f32[1,16], index: 4, kind: input, shape index: {}]
  %s5 = inlined_call_operand.vmem [shape: f32[16,32], index: 5, kind: input, shape index: {}]
  %s6 = inlined_call_operand.vmem [shape: f32[1,32], index: 6, kind: input, shape index: {}]
  %s7 = inlined_call_operand.vmem [shape: f32[32,4], index: 7, kind: input, shape index: {}]
  %s8 = inlined_call_operand.vmem [shape: f32[1,4], index: 8, kind: input, shape index: {}]
  %s9 = inlined_call_operand.hbm [shape: f32[2,4], index: 9, kind: output, shape index: {}]
  %s10 = sld [smem:[#allocation0]]
  $region54: #{tpu_custom_call.1} parent=0
    _
  %s12 = ssub.s32 1, %s10
  %s13 = scalar_select 0, %s12, %s10
  $region1: #{tpu_custom_call.1} parent=0
    #allocation2 [shape = 'u8[1024]{0}', space=vmem, size = 0x400, scoped, tag = 'output window, operand 0, single buffered']
    #allocation3 [shape = 's32[1]{0}', space=sflag, size = 0x4, scoped, tag = 'scoped memory for tpu_custom_call.1']
    %14 = vsyncpa [#allocation3], 0
    // Predicated region
    $region2: #{tpu_custom_call.1} parent=1 // pred_check
      _
    $region3: #{tpu_custom_call.1} parent=1 // pred_check_branch
      %16 = sbr.rel (0) target = $region5
    $region4: #{tpu_custom_call.1} parent=1 // pred_region
      _
    $region5: #{tpu_custom_call.1} parent=1 // pred_fallthru
      _
    // Predicated region
    $region6: #{tpu_custom_call.1} parent=1 // pred_check
      _
    $region7: #{tpu_custom_call.1} parent=1 // pred_check_branch
      %18 = sbr.rel (0) target = $region9
    $region8: #{tpu_custom_call.1} parent=1 // pred_region
      _
    $region9: #{tpu_custom_call.1} parent=1 // pred_fallthru
      _
    // Predicated region
    $region10: #{tpu_custom_call.1} parent=1 // pred_check
      _
    $region11: #{tpu_custom_call.1} parent=1 // pred_check_branch
      %20 = sbr.rel (0) target = $region13
    $region12: #{tpu_custom_call.1} parent=1 // pred_region
      _
    $region13: #{tpu_custom_call.1} parent=1 // pred_fallthru
      _
    // Predicated region
    $region14: #{tpu_custom_call.1} parent=1 // pred_check
      _
    $region15: #{tpu_custom_call.1} parent=1 // pred_check_branch
      %22 = sbr.rel (0) target = $region17
    $region16: #{tpu_custom_call.1} parent=1 // pred_region
      _
    $region17: #{tpu_custom_call.1} parent=1 // pred_fallthru
      _
    // Predicated region
    $region18: #{tpu_custom_call.1} parent=1 // pred_check
      _
    $region19: #{tpu_custom_call.1} parent=1 // pred_check_branch
      %24 = sbr.rel (0) target = $region21
    $region20: #{tpu_custom_call.1} parent=1 // pred_region
      _
    $region21: #{tpu_custom_call.1} parent=1 // pred_fallthru
      _
    // Predicated region
    $region22: #{tpu_custom_call.1} parent=1 // pred_check
      _
    $region23: #{tpu_custom_call.1} parent=1 // pred_check_branch
      %26 = sbr.rel (0) target = $region25
    $region24: #{tpu_custom_call.1} parent=1 // pred_region
      _
    $region25: #{tpu_custom_call.1} parent=1 // pred_fallthru
      _
    // Predicated region
    $region26: #{tpu_custom_call.1} parent=1 // pred_check
      _
    $region27: #{tpu_custom_call.1} parent=1 // pred_check_branch
      %28 = sbr.rel (0) target = $region29
    $region28: #{tpu_custom_call.1} parent=1 // pred_region
      _
    $region29: #{tpu_custom_call.1} parent=1 // pred_fallthru
      _
    // Predicated region
    $region30: #{tpu_custom_call.1} parent=1 // pred_check
      _
    $region31: #{tpu_custom_call.1} parent=1 // pred_check_branch
      %30 = sbr.rel (0) target = $region33
    $region32: #{tpu_custom_call.1} parent=1 // pred_region
      _
    $region33: #{tpu_custom_call.1} parent=1 // pred_fallthru
      _
    // Predicated region
    $region34: #{tpu_custom_call.1} parent=1 // pred_check
      _
    $region35: #{tpu_custom_call.1} parent=1 // pred_check_branch
      %32 = sbr.rel (0) target = $region37
    $region36: #{tpu_custom_call.1} parent=1 // pred_region
      _
    $region37: #{tpu_custom_call.1} parent=1 // pred_fallthru
      _
    %p33 = scmp.eq.s32.totalorder 0, 0
    // Predicated region
    $region38: #{tpu_custom_call.1} parent=1 // pred_check
      %p34 = pneg %p33
    $region39: #{tpu_custom_call.1} parent=1 // pred_check_branch
      %36 = sbr.rel (%p34) target = $region41
    $region40: #{tpu_custom_call.1} parent=1 // pred_region
      %vm37 = vcmask 25600
      %38 = vst.msk [vmem:[#allocation2] sm:$0x3] %vm37, 0.0
    $region41: #{tpu_custom_call.1} parent=1 // pred_fallthru
      _
    %v39 = vld [vmem:[%s0] sm:$0xff]
    %v40 = vld [vmem:[%s0 + $0x8] sm:$0xff]
    %v41 = vld [vmem:[%s1] sm:$0xff]
    %v42 = vld [vmem:[%s1 + $0x8] sm:$0xff]
    %v43 = vld [vmem:[%s1 + $0x10] sm:$0xff]
    %v44 = vld [vmem:[%s1 + $0x18] sm:$0xff]
    %v45 = vld [vmem:[%s2] sm:$0x1]
    %v47 = vperm.slane %v45, 0
    %vm49 = vcmask 261120
    %v51 = vsel %vm49, %v39, 0
    %v54 = vsel %vm49, %v40, 0
    %56 = vmatpush.msra.mxu0 0.0
    %57 = vmatpush.msra.mxu0 0.0
    %58 = vmatpush.msra.mxu0 0.0
    %59 = vmatpush.msra.mxu0 0.0
    %60 = vmatpush.msra.mxu0 0.0
    %61 = vmatpush.msra.mxu0 0.0
    %62 = vmatpush.msra.mxu0 0.0
    %63 = vmatpush.msra.mxu0 0.0
    %64 = vmatpush.msra.mxu0 0.0
    %65 = vmatpush.msra.mxu0 0.0
    %66 = vmatpush.msra.mxu0 0.0
    %67 = vmatpush.msra.mxu0 0.0
    %v68 = vand.u32 %v44, 4294901760
    %69 = vmatpush.msra.mxu0 %v68
    %v70 = vand.u32 %v43, 4294901760
    %71 = vmatpush.msra.mxu0 %v70
    %v72 = vand.u32 %v42, 4294901760
    %73 = vmatpush.msra.mxu0 %v72
    %v74 = vand.u32 %v41, 4294901760
    %75 = vmatpush.msra.mxu0 %v74
    %v76 = vand.u32 %v51, 4294901760
    %v77 = vsub.f32 %v51, %v76
    %v78 = vand.u32 %v77, 4294901760
    %v79 = vsub.f32 %v77, %v78
    %v80 = vand.u32 %v79, 4294901760
    %81 = vmatmul.f32.gmra.mxu0 %v80
    %v82 = vpop.f32.mrf.mxu0
    %v83 = vadd.f32 %v47, %v82
    %v84 = vand.u32 %v54, 4294901760
    %v85 = vsub.f32 %v54, %v84
    %v86 = vand.u32 %v85, 4294901760
    %v87 = vsub.f32 %v85, %v86
    %v88 = vand.u32 %v87, 4294901760
    %89 = vmatmul.f32.gmra.mxu0 %v88
    %v90 = vpop.f32.mrf.mxu0
    %v91 = vadd.f32 %v47, %v90
    %92 = vdwg.mxu0
    %93 = vmatpush.msra.mxu0 0.0
    %94 = vmatpush.msra.mxu0 0.0
    %95 = vmatpush.msra.mxu0 0.0
    %96 = vmatpush.msra.mxu0 0.0
    %97 = vmatpush.msra.mxu0 0.0
    %98 = vmatpush.msra.mxu0 0.0
    %99 = vmatpush.msra.mxu0 0.0
    %100 = vmatpush.msra.mxu0 0.0
    %101 = vmatpush.msra.mxu0 0.0
    %102 = vmatpush.msra.mxu0 0.0
    %103 = vmatpush.msra.mxu0 0.0
    %104 = vmatpush.msra.mxu0 0.0
    %v105 = vand.u32 %v44, 4294901760
    %v106 = vsub.f32 %v44, %v105
    %v107 = vand.u32 %v106, 4294901760
    %v108 = vsub.f32 %v106, %v107
    %v109 = vand.u32 %v108, 4294901760
    %110 = vmatpush.msra.mxu0 %v109
    %v111 = vand.u32 %v43, 4294901760
    %v112 = vsub.f32 %v43, %v111
    %v113 = vand.u32 %v112, 4294901760
    %v114 = vsub.f32 %v112, %v113
    %v115 = vand.u32 %v114, 4294901760
    %116 = vmatpush.msra.mxu0 %v115
    %v117 = vand.u32 %v42, 4294901760
    %v118 = vsub.f32 %v42, %v117
    %v119 = vand.u32 %v118, 4294901760
    %v120 = vsub.f32 %v118, %v119
    %v121 = vand.u32 %v120, 4294901760
    %122 = vmatpush.msra.mxu0 %v121
    %v123 = vand.u32 %v41, 4294901760
    %v124 = vsub.f32 %v41, %v123
    %v125 = vand.u32 %v124, 4294901760
    %v126 = vsub.f32 %v124, %v125
    %v127 = vand.u32 %v126, 4294901760
    %128 = vmatpush.msra.mxu0 %v127
    %v129 = vand.u32 %v51, 4294901760
    %130 = vmatmul.f32.gmra.mxu0 %v129
    %v131 = vpop.f32.mrf.mxu0
    %v132 = vadd.f32 %v83, %v131
    %v133 = vand.u32 %v54, 4294901760
    %134 = vmatmul.f32.gmra.mxu0 %v133
    %v135 = vpop.f32.mrf.mxu0
    %v136 = vadd.f32 %v91, %v135
    %137 = vdwg.mxu0
    %138 = vmatpush.msra.mxu0 0.0
    %139 = vmatpush.msra.mxu0 0.0
    %140 = vmatpush.msra.mxu0 0.0
    %141 = vmatpush.msra.mxu0 0.0
    %142 = vmatpush.msra.mxu0 0.0
    %143 = vmatpush.msra.mxu0 0.0
    %144 = vmatpush.msra.mxu0 0.0
    %145 = vmatpush.msra.mxu0 0.0
    %146 = vmatpush.msra.mxu0 0.0
    %147 = vmatpush.msra.mxu0 0.0
    %148 = vmatpush.msra.mxu0 0.0
    %149 = vmatpush.msra.mxu0 0.0
    %v150 = vand.u32 %v44, 4294901760
    %v151 = vsub.f32 %v44, %v150
    %152 = vmatpush.msra.mxu0 %v151
    %v153 = vand.u32 %v43, 4294901760
    %v154 = vsub.f32 %v43, %v153
    %155 = vmatpush.msra.mxu0 %v154
    %v156 = vand.u32 %v42, 4294901760
    %v157 = vsub.f32 %v42, %v156
    %158 = vmatpush.msra.mxu0 %v157
    %v159 = vand.u32 %v41, 4294901760
    %v160 = vsub.f32 %v41, %v159
    %161 = vmatpush.msra.mxu0 %v160
    %v162 = vand.u32 %v51, 4294901760
    %v163 = vsub.f32 %v51, %v162
    %164 = vmatmul.f32.gmra.mxu0 %v163
    %v165 = vpop.f32.mrf.mxu0
    %v166 = vadd.f32 %v132, %v165
    %v167 = vand.u32 %v54, 4294901760
    %v168 = vsub.f32 %v54, %v167
    %169 = vmatmul.f32.gmra.mxu0 %v168
    %v170 = vpop.f32.mrf.mxu0
    %v171 = vadd.f32 %v136, %v170
    %172 = vdwg.mxu0
    %173 = vmatpush.msra.mxu0 0.0
    %174 = vmatpush.msra.mxu0 0.0
    %175 = vmatpush.msra.mxu0 0.0
    %176 = vmatpush.msra.mxu0 0.0
    %177 = vmatpush.msra.mxu0 0.0
    %178 = vmatpush.msra.mxu0 0.0
    %179 = vmatpush.msra.mxu0 0.0
    %180 = vmatpush.msra.mxu0 0.0
    %181 = vmatpush.msra.mxu0 0.0
    %182 = vmatpush.msra.mxu0 0.0
    %183 = vmatpush.msra.mxu0 0.0
    %184 = vmatpush.msra.mxu0 0.0
    %v185 = vand.u32 %v44, 4294901760
    %186 = vmatpush.msra.mxu0 %v185
    %v187 = vand.u32 %v43, 4294901760
    %188 = vmatpush.msra.mxu0 %v187
    %v189 = vand.u32 %v42, 4294901760
    %190 = vmatpush.msra.mxu0 %v189
    %v191 = vand.u32 %v41, 4294901760
    %192 = vmatpush.msra.mxu0 %v191
    %v193 = vand.u32 %v51, 4294901760
    %v194 = vsub.f32 %v51, %v193
    %v195 = vand.u32 %v194, 4294901760
    %196 = vmatmul.f32.gmra.mxu0 %v195
    %v197 = vpop.f32.mrf.mxu0
    %v198 = vadd.f32 %v166, %v197
    %v199 = vand.u32 %v54, 4294901760
    %v200 = vsub.f32 %v54, %v199
    %v201 = vand.u32 %v200, 4294901760
    %202 = vmatmul.f32.gmra.mxu0 %v201
    %v203 = vpop.f32.mrf.mxu0
    %v204 = vadd.f32 %v171, %v203
    %205 = vdwg.mxu0
    %206 = vmatpush.msra.mxu0 0.0
    %207 = vmatpush.msra.mxu0 0.0
    %208 = vmatpush.msra.mxu0 0.0
    %209 = vmatpush.msra.mxu0 0.0
    %210 = vmatpush.msra.mxu0 0.0
    %211 = vmatpush.msra.mxu0 0.0
    %212 = vmatpush.msra.mxu0 0.0
    %213 = vmatpush.msra.mxu0 0.0
    %214 = vmatpush.msra.mxu0 0.0
    %215 = vmatpush.msra.mxu0 0.0
    %216 = vmatpush.msra.mxu0 0.0
    %217 = vmatpush.msra.mxu0 0.0
    %v218 = vand.u32 %v44, 4294901760
    %v219 = vsub.f32 %v44, %v218
    %v220 = vand.u32 %v219, 4294901760
    %221 = vmatpush.msra.mxu0 %v220
    %v222 = vand.u32 %v43, 4294901760
    %v223 = vsub.f32 %v43, %v222
    %v224 = vand.u32 %v223, 4294901760
    %225 = vmatpush.msra.mxu0 %v224
    %v226 = vand.u32 %v42, 4294901760
    %v227 = vsub.f32 %v42, %v226
    %v228 = vand.u32 %v227, 4294901760
    %229 = vmatpush.msra.mxu0 %v228
    %v230 = vand.u32 %v41, 4294901760
    %v231 = vsub.f32 %v41, %v230
    %v232 = vand.u32 %v231, 4294901760
    %233 = vmatpush.msra.mxu0 %v232
    %v234 = vand.u32 %v51, 4294901760
    %235 = vmatmul.f32.gmra.mxu0 %v234
    %v236 = vpop.f32.mrf.mxu0
    %v237 = vadd.f32 %v198, %v236
    %v238 = vand.u32 %v54, 4294901760
    %239 = vmatmul.f32.gmra.mxu0 %v238
    %v240 = vpop.f32.mrf.mxu0
    %v241 = vadd.f32 %v204, %v240
    %242 = vdwg.mxu0
    %243 = vmatpush.msra.mxu0 0.0
    %244 = vmatpush.msra.mxu0 0.0
    %245 = vmatpush.msra.mxu0 0.0
    %246 = vmatpush.msra.mxu0 0.0
    %247 = vmatpush.msra.mxu0 0.0
    %248 = vmatpush.msra.mxu0 0.0
    %249 = vmatpush.msra.mxu0 0.0
    %250 = vmatpush.msra.mxu0 0.0
    %251 = vmatpush.msra.mxu0 0.0
    %252 = vmatpush.msra.mxu0 0.0
    %253 = vmatpush.msra.mxu0 0.0
    %254 = vmatpush.msra.mxu0 0.0
    %v255 = vand.u32 %v44, 4294901760
    %256 = vmatpush.msra.mxu0 %v255
    %v257 = vand.u32 %v43, 4294901760
    %258 = vmatpush.msra.mxu0 %v257
    %v259 = vand.u32 %v42, 4294901760
    %260 = vmatpush.msra.mxu0 %v259
    %v261 = vand.u32 %v41, 4294901760
    %262 = vmatpush.msra.mxu0 %v261
    %v263 = vand.u32 %v51, 4294901760
    %264 = vmatmul.f32.gmra.mxu0 %v263
    %v265 = vpop.f32.mrf.mxu0
    %v266 = vadd.f32 %v237, %v265
    %v267 = vand.u32 %v54, 4294901760
    %268 = vmatmul.f32.gmra.mxu0 %v267
    %v269 = vpop.f32.mrf.mxu0
    %v270 = vadd.f32 %v241, %v269
    %271 = vdwg.mxu0
    %v272 = vmul.f32 %v266, 0.5
    %v273 = vmul.f32 %v270, 0.5
    %v274 = vmul.f32 %v266, 0.70710677
    %v275 = vmul.f32 %v270, 0.70710677
    %v276 = vmul.f32 %v274, %v274
    %v277 = vmin.f32 16.0, %v276
    %v278 = vmul.f32 %v277, 2.1237322e-06
    %v279 = vadd.f32 %v278, 0.00028619796
    %v280 = vmul.f32 %v277, %v279
    %v281 = vadd.f32 %v280, 0.0036580483
    %v282 = vmul.f32 %v277, %v281
    %v283 = vadd.f32 %v282, 0.05243302
    %v284 = vmul.f32 %v277, %v283
    %v285 = vadd.f32 %v284, 0.18741608
    %v286 = vmul.f32 %v277, %v285
    %v287 = vadd.f32 %v286, 1.1283791
    %v288 = vmul.f32 %v274, %v287
    %v289 = vmul.f32 %v277, 3.8918573e-05
    %v290 = vadd.f32 %v289, 0.001143296
    %v291 = vmul.f32 %v277, %v290
    %v292 = vadd.f32 %v291, 0.014752088
    %v293 = vmul.f32 %v277, %v292
    %v294 = vadd.f32 %v293, 0.112945676
    %v295 = vmul.f32 %v277, %v294
    %v296 = vadd.f32 %v295, 0.4994258
    %v297 = vmul.f32 %v277, %v296
    %v298 = vadd.f32 %v297, 1.0
    %v299 = vrcp.pop %v298
    %v300 = vmul.f32 %v298, %v299
    %v301 = vsub.f32 1.0, %v300
    %v302 = vmul.f32 %v299, %v301
    %v303 = vadd.f32 %v299, %v302
    %vm304 = vweird.f32 %v298
    %vm305 = vweird.f32 %v299
    %vm306 = vmor %vm304, %vm305
    %v307 = vsel %vm306, %v299, %v303
    %v308 = vand.u32 2147483647, %v298
    %vm309 = vcmp.eq.f32.partialorder %v308, 8.507059e+37
    %v310 = vand.u32 %v298, 2147483648
    %v311 = vor.u32 1.1754944e-38, %v310
    %v312 = vsel %vm309, %v311, %v307
    %v313 = vmul.f32 %v288, %v312
    %v314 = vmin.f32 %v313, 1.0
    %v315 = vmax.f32 %v314, -1.0
    %v316 = vmul.f32 %v275, %v275
    %v317 = vmin.f32 16.0, %v316
    %v318 = vmul.f32 %v317, 2.1237322e-06
    %v319 = vadd.f32 %v318, 0.00028619796
    %v320 = vmul.f32 %v317, %v319
    %v321 = vadd.f32 %v320, 0.0036580483
    %v322 = vmul.f32 %v317, %v321
    %v323 = vadd.f32 %v322, 0.05243302
    %v324 = vmul.f32 %v317, %v323
    %v325 = vadd.f32 %v324, 0.18741608
    %v326 = vmul.f32 %v317, %v325
    %v327 = vadd.f32 %v326, 1.1283791
    %v328 = vmul.f32 %v275, %v327
    %v329 = vmul.f32 %v317, 3.8918573e-05
    %v330 = vadd.f32 %v329, 0.001143296
    %v331 = vmul.f32 %v317, %v330
    %v332 = vadd.f32 %v331, 0.014752088
    %v333 = vmul.f32 %v317, %v332
    %v334 = vadd.f32 %v333, 0.112945676
    %v335 = vmul.f32 %v317, %v334
    %v336 = vadd.f32 %v335, 0.4994258
    %v337 = vmul.f32 %v317, %v336
    %v338 = vadd.f32 %v337, 1.0
    %v339 = vrcp.pop %v338
    %v340 = vmul.f32 %v338, %v339
    %v341 = vsub.f32 1.0, %v340
    %v342 = vmul.f32 %v339, %v341
    %v343 = vadd.f32 %v339, %v342
    %vm344 = vweird.f32 %v338
    %vm345 = vweird.f32 %v339
    %vm346 = vmor %vm344, %vm345
    %v347 = vsel %vm346, %v339, %v343
    %v348 = vand.u32 2147483647, %v338
    %vm349 = vcmp.eq.f32.partialorder %v348, 8.507059e+37
    %v350 = vand.u32 %v338, 2147483648
    %v351 = vor.u32 1.1754944e-38, %v350
    %v352 = vsel %vm349, %v351, %v347
    %v353 = vmul.f32 %v328, %v352
    %v354 = vmin.f32 %v353, 1.0
    %v355 = vmax.f32 %v354, -1.0
    %v356 = vadd.f32 %v315, 1.0
    %v357 = vadd.f32 %v355, 1.0
    %v358 = vmul.f32 %v272, %v356
    %v359 = vmul.f32 %v273, %v357
    %v360 = vld [vmem:[%s3] sm:$0xff]
    %v361 = vld [vmem:[%s3 + $0x8] sm:$0xff]
    %v362 = vld [vmem:[%s3 + $0x10] sm:$0xff]
    %v363 = vld [vmem:[%s3 + $0x18] sm:$0xff]
    %v364 = vld [vmem:[%s3 + $0x20] sm:$0xff]
    %v365 = vld [vmem:[%s3 + $0x28] sm:$0xff]
    %v366 = vld [vmem:[%s3 + $0x30] sm:$0xff]
    %v367 = vld [vmem:[%s3 + $0x38] sm:$0xff]
    %v368 = vld [vmem:[%s4] sm:$0x1]
    %v370 = vperm.slane %v368, 0
    %vm372 = vcmask 523264
    %v374 = vsel %vm372, %v358, 0
    %v377 = vsel %vm372, %v359, 0
    %379 = vmatpush.msra.mxu0 0.0
    %380 = vmatpush.msra.mxu0 0.0
    %381 = vmatpush.msra.mxu0 0.0
    %382 = vmatpush.msra.mxu0 0.0
    %383 = vmatpush.msra.mxu0 0.0
    %384 = vmatpush.msra.mxu0 0.0
    %385 = vmatpush.msra.mxu0 0.0
    %386 = vmatpush.msra.mxu0 0.0
    %v387 = vand.u32 %v367, 4294901760
    %388 = vmatpush.msra.mxu0 %v387
    %v389 = vand.u32 %v366, 4294901760
    %390 = vmatpush.msra.mxu0 %v389
    %v391 = vand.u32 %v365, 4294901760
    %392 = vmatpush.msra.mxu0 %v391
    %v393 = vand.u32 %v364, 4294901760
    %394 = vmatpush.msra.mxu0 %v393
    %v395 = vand.u32 %v363, 4294901760
    %396 = vmatpush.msra.mxu0 %v395
    %v397 = vand.u32 %v362, 4294901760
    %398 = vmatpush.msra.mxu0 %v397
    %v399 = vand.u32 %v361, 4294901760
    %400 = vmatpush.msra.mxu0 %v399
    %v401 = vand.u32 %v360, 4294901760
    %402 = vmatpush.msra.mxu0 %v401
    %v403 = vand.u32 %v374, 4294901760
    %v404 = vsub.f32 %v374, %v403
    %v405 = vand.u32 %v404, 4294901760
    %v406 = vsub.f32 %v404, %v405
    %v407 = vand.u32 %v406, 4294901760
    %408 = vmatmul.f32.gmra.mxu0 %v407
    %v409 = vpop.f32.mrf.mxu0
    %v410 = vadd.f32 %v370, %v409
    %v411 = vand.u32 %v377, 4294901760
    %v412 = vsub.f32 %v377, %v411
    %v413 = vand.u32 %v412, 4294901760
    %v414 = vsub.f32 %v412, %v413
    %v415 = vand.u32 %v414, 4294901760
    %416 = vmatmul.f32.gmra.mxu0 %v415
    %v417 = vpop.f32.mrf.mxu0
    %v418 = vadd.f32 %v370, %v417
    %419 = vdwg.mxu0
    %420 = vmatpush.msra.mxu0 0.0
    %421 = vmatpush.msra.mxu0 0.0
    %422 = vmatpush.msra.mxu0 0.0
    %423 = vmatpush.msra.mxu0 0.0
    %424 = vmatpush.msra.mxu0 0.0
    %425 = vmatpush.msra.mxu0 0.0
    %426 = vmatpush.msra.mxu0 0.0
    %427 = vmatpush.msra.mxu0 0.0
    %v428 = vand.u32 %v367, 4294901760
    %v429 = vsub.f32 %v367, %v428
    %v430 = vand.u32 %v429, 4294901760
    %v431 = vsub.f32 %v429, %v430
    %v432 = vand.u32 %v431, 4294901760
    %433 = vmatpush.msra.mxu0 %v432
    %v434 = vand.u32 %v366, 4294901760
    %v435 = vsub.f32 %v366, %v434
    %v436 = vand.u32 %v435, 4294901760
    %v437 = vsub.f32 %v435, %v436
    %v438 = vand.u32 %v437, 4294901760
    %439 = vmatpush.msra.mxu0 %v438
    %v440 = vand.u32 %v365, 4294901760
    %v441 = vsub.f32 %v365, %v440
    %v442 = vand.u32 %v441, 4294901760
    %v443 = vsub.f32 %v441, %v442
    %v444 = vand.u32 %v443, 4294901760
    %445 = vmatpush.msra.mxu0 %v444
    %v446 = vand.u32 %v364, 4294901760
    %v447 = vsub.f32 %v364, %v446
    %v448 = vand.u32 %v447, 4294901760
    %v449 = vsub.f32 %v447, %v448
    %v450 = vand.u32 %v449, 4294901760
    %451 = vmatpush.msra.mxu0 %v450
    %v452 = vand.u32 %v363, 4294901760
    %v453 = vsub.f32 %v363, %v452
    %v454 = vand.u32 %v453, 4294901760
    %v455 = vsub.f32 %v453, %v454
    %v456 = vand.u32 %v455, 4294901760
    %457 = vmatpush.msra.mxu0 %v456
    %v458 = vand.u32 %v362, 4294901760
    %v459 = vsub.f32 %v362, %v458
    %v460 = vand.u32 %v459, 4294901760
    %v461 = vsub.f32 %v459, %v460
    %v462 = vand.u32 %v461, 4294901760
    %463 = vmatpush.msra.mxu0 %v462
    %v464 = vand.u32 %v361, 4294901760
    %v465 = vsub.f32 %v361, %v464
    %v466 = vand.u32 %v465, 4294901760
    %v467 = vsub.f32 %v465, %v466
    %v468 = vand.u32 %v467, 4294901760
    %469 = vmatpush.msra.mxu0 %v468
    %v470 = vand.u32 %v360, 4294901760
    %v471 = vsub.f32 %v360, %v470
    %v472 = vand.u32 %v471, 4294901760
    %v473 = vsub.f32 %v471, %v472
    %v474 = vand.u32 %v473, 4294901760
    %475 = vmatpush.msra.mxu0 %v474
    %v476 = vand.u32 %v374, 4294901760
    %477 = vmatmul.f32.gmra.mxu0 %v476
    %v478 = vpop.f32.mrf.mxu0
    %v479 = vadd.f32 %v410, %v478
    %v480 = vand.u32 %v377, 4294901760
    %481 = vmatmul.f32.gmra.mxu0 %v480
    %v482 = vpop.f32.mrf.mxu0
    %v483 = vadd.f32 %v418, %v482
    %484 = vdwg.mxu0
    %485 = vmatpush.msra.mxu0 0.0
    %486 = vmatpush.msra.mxu0 0.0
    %487 = vmatpush.msra.mxu0 0.0
    %488 = vmatpush.msra.mxu0 0.0
    %489 = vmatpush.msra.mxu0 0.0
    %490 = vmatpush.msra.mxu0 0.0
    %491 = vmatpush.msra.mxu0 0.0
    %492 = vmatpush.msra.mxu0 0.0
    %v493 = vand.u32 %v367, 4294901760
    %v494 = vsub.f32 %v367, %v493
    %495 = vmatpush.msra.mxu0 %v494
    %v496 = vand.u32 %v366, 4294901760
    %v497 = vsub.f32 %v366, %v496
    %498 = vmatpush.msra.mxu0 %v497
    %v499 = vand.u32 %v365, 4294901760
    %v500 = vsub.f32 %v365, %v499
    %501 = vmatpush.msra.mxu0 %v500
    %v502 = vand.u32 %v364, 4294901760
    %v503 = vsub.f32 %v364, %v502
    %504 = vmatpush.msra.mxu0 %v503
    %v505 = vand.u32 %v363, 4294901760
    %v506 = vsub.f32 %v363, %v505
    %507 = vmatpush.msra.mxu0 %v506
    %v508 = vand.u32 %v362, 4294901760
    %v509 = vsub.f32 %v362, %v508
    %510 = vmatpush.msra.mxu0 %v509
    %v511 = vand.u32 %v361, 4294901760
    %v512 = vsub.f32 %v361, %v511
    %513 = vmatpush.msra.mxu0 %v512
    %v514 = vand.u32 %v360, 4294901760
    %v515 = vsub.f32 %v360, %v514
    %516 = vmatpush.msra.mxu0 %v515
    %v517 = vand.u32 %v374, 4294901760
    %v518 = vsub.f32 %v374, %v517
    %519 = vmatmul.f32.gmra.mxu0 %v518
    %v520 = vpop.f32.mrf.mxu0
    %v521 = vadd.f32 %v479, %v520
    %v522 = vand.u32 %v377, 4294901760
    %v523 = vsub.f32 %v377, %v522
    %524 = vmatmul.f32.gmra.mxu0 %v523
    %v525 = vpop.f32.mrf.mxu0
    %v526 = vadd.f32 %v483, %v525
    %527 = vdwg.mxu0
    %528 = vmatpush.msra.mxu0 0.0
    %529 = vmatpush.msra.mxu0 0.0
    %530 = vmatpush.msra.mxu0 0.0
    %531 = vmatpush.msra.mxu0 0.0
    %532 = vmatpush.msra.mxu0 0.0
    %533 = vmatpush.msra.mxu0 0.0
    %534 = vmatpush.msra.mxu0 0.0
    %535 = vmatpush.msra.mxu0 0.0
    %v536 = vand.u32 %v367, 4294901760
    %537 = vmatpush.msra.mxu0 %v536
    %v538 = vand.u32 %v366, 4294901760
    %539 = vmatpush.msra.mxu0 %v538
    %v540 = vand.u32 %v365, 4294901760
    %541 = vmatpush.msra.mxu0 %v540
    %v542 = vand.u32 %v364, 4294901760
    %543 = vmatpush.msra.mxu0 %v542
    %v544 = vand.u32 %v363, 4294901760
    %545 = vmatpush.msra.mxu0 %v544
    %v546 = vand.u32 %v362, 4294901760
    %547 = vmatpush.msra.mxu0 %v546
    %v548 = vand.u32 %v361, 4294901760
    %549 = vmatpush.msra.mxu0 %v548
    %v550 = vand.u32 %v360, 4294901760
    %551 = vmatpush.msra.mxu0 %v550
    %v552 = vand.u32 %v374, 4294901760
    %v553 = vsub.f32 %v374, %v552
    %v554 = vand.u32 %v553, 4294901760
    %555 = vmatmul.f32.gmra.mxu0 %v554
    %v556 = vpop.f32.mrf.mxu0
    %v557 = vadd.f32 %v521, %v556
    %v558 = vand.u32 %v377, 4294901760
    %v559 = vsub.f32 %v377, %v558
    %v560 = vand.u32 %v559, 4294901760
    %561 = vmatmul.f32.gmra.mxu0 %v560
    %v562 = vpop.f32.mrf.mxu0
    %v563 = vadd.f32 %v526, %v562
    %564 = vdwg.mxu0
    %565 = vmatpush.msra.mxu0 0.0
    %566 = vmatpush.msra.mxu0 0.0
    %567 = vmatpush.msra.mxu0 0.0
    %568 = vmatpush.msra.mxu0 0.0
    %569 = vmatpush.msra.mxu0 0.0
    %570 = vmatpush.msra.mxu0 0.0
    %571 = vmatpush.msra.mxu0 0.0
    %572 = vmatpush.msra.mxu0 0.0
    %v573 = vand.u32 %v367, 4294901760
    %v574 = vsub.f32 %v367, %v573
    %v575 = vand.u32 %v574, 4294901760
    %576 = vmatpush.msra.mxu0 %v575
    %v577 = vand.u32 %v366, 4294901760
    %v578 = vsub.f32 %v366, %v577
    %v579 = vand.u32 %v578, 4294901760
    %580 = vmatpush.msra.mxu0 %v579
    %v581 = vand.u32 %v365, 4294901760
    %v582 = vsub.f32 %v365, %v581
    %v583 = vand.u32 %v582, 4294901760
    %584 = vmatpush.msra.mxu0 %v583
    %v585 = vand.u32 %v364, 4294901760
    %v586 = vsub.f32 %v364, %v585
    %v587 = vand.u32 %v586, 4294901760
    %588 = vmatpush.msra.mxu0 %v587
    %v589 = vand.u32 %v363, 4294901760
    %v590 = vsub.f32 %v363, %v589
    %v591 = vand.u32 %v590, 4294901760
    %592 = vmatpush.msra.mxu0 %v591
    %v593 = vand.u32 %v362, 4294901760
    %v594 = vsub.f32 %v362, %v593
    %v595 = vand.u32 %v594, 4294901760
    %596 = vmatpush.msra.mxu0 %v595
    %v597 = vand.u32 %v361, 4294901760
    %v598 = vsub.f32 %v361, %v597
    %v599 = vand.u32 %v598, 4294901760
    %600 = vmatpush.msra.mxu0 %v599
    %v601 = vand.u32 %v360, 4294901760
    %v602 = vsub.f32 %v360, %v601
    %v603 = vand.u32 %v602, 4294901760
    %604 = vmatpush.msra.mxu0 %v603
    %v605 = vand.u32 %v374, 4294901760
    %606 = vmatmul.f32.gmra.mxu0 %v605
    %v607 = vpop.f32.mrf.mxu0
    %v608 = vadd.f32 %v557, %v607
    %v609 = vand.u32 %v377, 4294901760
    %610 = vmatmul.f32.gmra.mxu0 %v609
    %v611 = vpop.f32.mrf.mxu0
    %v612 = vadd.f32 %v563, %v611
    %613 = vdwg.mxu0
    %614 = vmatpush.msra.mxu0 0.0
    %615 = vmatpush.msra.mxu0 0.0
    %616 = vmatpush.msra.mxu0 0.0
    %617 = vmatpush.msra.mxu0 0.0
    %618 = vmatpush.msra.mxu0 0.0
    %619 = vmatpush.msra.mxu0 0.0
    %620 = vmatpush.msra.mxu0 0.0
    %621 = vmatpush.msra.mxu0 0.0
    %v622 = vand.u32 %v367, 4294901760
    %623 = vmatpush.msra.mxu0 %v622
    %v624 = vand.u32 %v366, 4294901760
    %625 = vmatpush.msra.mxu0 %v624
    %v626 = vand.u32 %v365, 4294901760
    %627 = vmatpush.msra.mxu0 %v626
    %v628 = vand.u32 %v364, 4294901760
    %629 = vmatpush.msra.mxu0 %v628
    %v630 = vand.u32 %v363, 4294901760
    %631 = vmatpush.msra.mxu0 %v630
    %v632 = vand.u32 %v362, 4294901760
    %633 = vmatpush.msra.mxu0 %v632
    %v634 = vand.u32 %v361, 4294901760
    %635 = vmatpush.msra.mxu0 %v634
    %v636 = vand.u32 %v360, 4294901760
    %637 = vmatpush.msra.mxu0 %v636
    %v638 = vand.u32 %v374, 4294901760
    %639 = vmatmul.f32.gmra.mxu0 %v638
    %v640 = vpop.f32.mrf.mxu0
    %v641 = vadd.f32 %v608, %v640
    %v642 = vand.u32 %v377, 4294901760
    %643 = vmatmul.f32.gmra.mxu0 %v642
    %v644 = vpop.f32.mrf.mxu0
    %v645 = vadd.f32 %v612, %v644
    %646 = vdwg.mxu0
    %v647 = vld [vmem:[%s5] sm:$0xff]
    %v648 = vld [vmem:[%s5 + $0x8] sm:$0xff]
    %v649 = vld [vmem:[%s6] sm:$0x1]
    %v651 = vperm.slane %v649, 0
    %vm653 = vcmask 130048
    %v655 = vsel %vm653, %v641, 0
    %v658 = vsel %vm653, %v645, 0
    %660 = vmatpush.msra.mxu0 0.0
    %661 = vmatpush.msra.mxu0 0.0
    %662 = vmatpush.msra.mxu0 0.0
    %663 = vmatpush.msra.mxu0 0.0
    %664 = vmatpush.msra.mxu0 0.0
    %665 = vmatpush.msra.mxu0 0.0
    %666 = vmatpush.msra.mxu0 0.0
    %667 = vmatpush.msra.mxu0 0.0
    %668 = vmatpush.msra.mxu0 0.0
    %669 = vmatpush.msra.mxu0 0.0
    %670 = vmatpush.msra.mxu0 0.0
    %671 = vmatpush.msra.mxu0 0.0
    %672 = vmatpush.msra.mxu0 0.0
    %673 = vmatpush.msra.mxu0 0.0
    %v674 = vand.u32 %v648, 4294901760
    %675 = vmatpush.msra.mxu0 %v674
    %v676 = vand.u32 %v647, 4294901760
    %677 = vmatpush.msra.mxu0 %v676
    %v678 = vand.u32 %v655, 4294901760
    %v679 = vsub.f32 %v655, %v678
    %v680 = vand.u32 %v679, 4294901760
    %v681 = vsub.f32 %v679, %v680
    %v682 = vand.u32 %v681, 4294901760
    %683 = vmatmul.f32.gmra.mxu0 %v682
    %v684 = vpop.f32.mrf.mxu0
    %v685 = vadd.f32 %v651, %v684
    %v686 = vand.u32 %v658, 4294901760
    %v687 = vsub.f32 %v658, %v686
    %v688 = vand.u32 %v687, 4294901760
    %v689 = vsub.f32 %v687, %v688
    %v690 = vand.u32 %v689, 4294901760
    %691 = vmatmul.f32.gmra.mxu0 %v690
    %v692 = vpop.f32.mrf.mxu0
    %v693 = vadd.f32 %v651, %v692
    %694 = vdwg.mxu0
    %695 = vmatpush.msra.mxu0 0.0
    %696 = vmatpush.msra.mxu0 0.0
    %697 = vmatpush.msra.mxu0 0.0
    %698 = vmatpush.msra.mxu0 0.0
    %699 = vmatpush.msra.mxu0 0.0
    %700 = vmatpush.msra.mxu0 0.0
    %701 = vmatpush.msra.mxu0 0.0
    %702 = vmatpush.msra.mxu0 0.0
    %703 = vmatpush.msra.mxu0 0.0
    %704 = vmatpush.msra.mxu0 0.0
    %705 = vmatpush.msra.mxu0 0.0
    %706 = vmatpush.msra.mxu0 0.0
    %707 = vmatpush.msra.mxu0 0.0
    %708 = vmatpush.msra.mxu0 0.0
    %v709 = vand.u32 %v648, 4294901760
    %v710 = vsub.f32 %v648, %v709
    %v711 = vand.u32 %v710, 4294901760
    %v712 = vsub.f32 %v710, %v711
    %v713 = vand.u32 %v712, 4294901760
    %714 = vmatpush.msra.mxu0 %v713
    %v715 = vand.u32 %v647, 4294901760
    %v716 = vsub.f32 %v647, %v715
    %v717 = vand.u32 %v716, 4294901760
    %v718 = vsub.f32 %v716, %v717
    %v719 = vand.u32 %v718, 4294901760
    %720 = vmatpush.msra.mxu0 %v719
    %v721 = vand.u32 %v655, 4294901760
    %722 = vmatmul.f32.gmra.mxu0 %v721
    %v723 = vpop.f32.mrf.mxu0
    %v724 = vadd.f32 %v685, %v723
    %v725 = vand.u32 %v658, 4294901760
    %726 = vmatmul.f32.gmra.mxu0 %v725
    %v727 = vpop.f32.mrf.mxu0
    %v728 = vadd.f32 %v693, %v727
    %729 = vdwg.mxu0
    %730 = vmatpush.msra.mxu0 0.0
    %731 = vmatpush.msra.mxu0 0.0
    %732 = vmatpush.msra.mxu0 0.0
    %733 = vmatpush.msra.mxu0 0.0
    %734 = vmatpush.msra.mxu0 0.0
    %735 = vmatpush.msra.mxu0 0.0
    %736 = vmatpush.msra.mxu0 0.0
    %737 = vmatpush.msra.mxu0 0.0
    %738 = vmatpush.msra.mxu0 0.0
    %739 = vmatpush.msra.mxu0 0.0
    %740 = vmatpush.msra.mxu0 0.0
    %741 = vmatpush.msra.mxu0 0.0
    %742 = vmatpush.msra.mxu0 0.0
    %743 = vmatpush.msra.mxu0 0.0
    %v744 = vand.u32 %v648, 4294901760
    %v745 = vsub.f32 %v648, %v744
    %746 = vmatpush.msra.mxu0 %v745
    %v747 = vand.u32 %v647, 4294901760
    %v748 = vsub.f32 %v647, %v747
    %749 = vmatpush.msra.mxu0 %v748
    %v750 = vand.u32 %v655, 4294901760
    %v751 = vsub.f32 %v655, %v750
    %752 = vmatmul.f32.gmra.mxu0 %v751
    %v753 = vpop.f32.mrf.mxu0
    %v754 = vadd.f32 %v724, %v753
    %v755 = vand.u32 %v658, 4294901760
    %v756 = vsub.f32 %v658, %v755
    %757 = vmatmul.f32.gmra.mxu0 %v756
    %v758 = vpop.f32.mrf.mxu0
    %v759 = vadd.f32 %v728, %v758
    %760 = vdwg.mxu0
    %761 = vmatpush.msra.mxu0 0.0
    %762 = vmatpush.msra.mxu0 0.0
    %763 = vmatpush.msra.mxu0 0.0
    %764 = vmatpush.msra.mxu0 0.0
    %765 = vmatpush.msra.mxu0 0.0
    %766 = vmatpush.msra.mxu0 0.0
    %767 = vmatpush.msra.mxu0 0.0
    %768 = vmatpush.msra.mxu0 0.0
    %769 = vmatpush.msra.mxu0 0.0
    %770 = vmatpush.msra.mxu0 0.0
    %771 = vmatpush.msra.mxu0 0.0
    %772 = vmatpush.msra.mxu0 0.0
    %773 = vmatpush.msra.mxu0 0.0
    %774 = vmatpush.msra.mxu0 0.0
    %v775 = vand.u32 %v648, 4294901760
    %776 = vmatpush.msra.mxu0 %v775
    %v777 = vand.u32 %v647, 4294901760
    %778 = vmatpush.msra.mxu0 %v777
    %v779 = vand.u32 %v655, 4294901760
    %v780 = vsub.f32 %v655, %v779
    %v781 = vand.u32 %v780, 4294901760
    %782 = vmatmul.f32.gmra.mxu0 %v781
    %v783 = vpop.f32.mrf.mxu0
    %v784 = vadd.f32 %v754, %v783
    %v785 = vand.u32 %v658, 4294901760
    %v786 = vsub.f32 %v658, %v785
    %v787 = vand.u32 %v786, 4294901760
    %788 = vmatmul.f32.gmra.mxu0 %v787
    %v789 = vpop.f32.mrf.mxu0
    %v790 = vadd.f32 %v759, %v789
    %791 = vdwg.mxu0
    %792 = vmatpush.msra.mxu0 0.0
    %793 = vmatpush.msra.mxu0 0.0
    %794 = vmatpush.msra.mxu0 0.0
    %795 = vmatpush.msra.mxu0 0.0
    %796 = vmatpush.msra.mxu0 0.0
    %797 = vmatpush.msra.mxu0 0.0
    %798 = vmatpush.msra.mxu0 0.0
    %799 = vmatpush.msra.mxu0 0.0
    %800 = vmatpush.msra.mxu0 0.0
    %801 = vmatpush.msra.mxu0 0.0
    %802 = vmatpush.msra.mxu0 0.0
    %803 = vmatpush.msra.mxu0 0.0
    %804 = vmatpush.msra.mxu0 0.0
    %805 = vmatpush.msra.mxu0 0.0
    %v806 = vand.u32 %v648, 4294901760
    %v807 = vsub.f32 %v648, %v806
    %v808 = vand.u32 %v807, 4294901760
    %809 = vmatpush.msra.mxu0 %v808
    %v810 = vand.u32 %v647, 4294901760
    %v811 = vsub.f32 %v647, %v810
    %v812 = vand.u32 %v811, 4294901760
    %813 = vmatpush.msra.mxu0 %v812
    %v814 = vand.u32 %v655, 4294901760
    %815 = vmatmul.f32.gmra.mxu0 %v814
    %v816 = vpop.f32.mrf.mxu0
    %v817 = vadd.f32 %v784, %v816
    %v818 = vand.u32 %v658, 4294901760
    %819 = vmatmul.f32.gmra.mxu0 %v818
    %v820 = vpop.f32.mrf.mxu0
    %v821 = vadd.f32 %v790, %v820
    %822 = vdwg.mxu0
    %823 = vmatpush.msra.mxu0 0.0
    %824 = vmatpush.msra.mxu0 0.0
    %825 = vmatpush.msra.mxu0 0.0
    %826 = vmatpush.msra.mxu0 0.0
    %827 = vmatpush.msra.mxu0 0.0
    %828 = vmatpush.msra.mxu0 0.0
    %829 = vmatpush.msra.mxu0 0.0
    %830 = vmatpush.msra.mxu0 0.0
    %831 = vmatpush.msra.mxu0 0.0
    %832 = vmatpush.msra.mxu0 0.0
    %833 = vmatpush.msra.mxu0 0.0
    %834 = vmatpush.msra.mxu0 0.0
    %835 = vmatpush.msra.mxu0 0.0
    %836 = vmatpush.msra.mxu0 0.0
    %v837 = vand.u32 %v648, 4294901760
    %838 = vmatpush.msra.mxu0 %v837
    %v839 = vand.u32 %v647, 4294901760
    %840 = vmatpush.msra.mxu0 %v839
    %v841 = vand.u32 %v655, 4294901760
    %842 = vmatmul.f32.gmra.mxu0 %v841
    %v843 = vpop.f32.mrf.mxu0
    %v844 = vadd.f32 %v817, %v843
    %v845 = vand.u32 %v658, 4294901760
    %846 = vmatmul.f32.gmra.mxu0 %v845
    %v847 = vpop.f32.mrf.mxu0
    %v848 = vadd.f32 %v821, %v847
    %849 = vdwg.mxu0
    %v850 = vmul.f32 %v844, 0.5
    %v851 = vmul.f32 %v848, 0.5
    %v852 = vmul.f32 %v844, 0.70710677
    %v853 = vmul.f32 %v848, 0.70710677
    %v854 = vmul.f32 %v852, %v852
    %v855 = vmin.f32 16.0, %v854
    %v856 = vmul.f32 %v855, 2.1237322e-06
    %v857 = vadd.f32 %v856, 0.00028619796
    %v858 = vmul.f32 %v855, %v857
    %v859 = vadd.f32 %v858, 0.0036580483
    %v860 = vmul.f32 %v855, %v859
    %v861 = vadd.f32 %v860, 0.05243302
    %v862 = vmul.f32 %v855, %v861
    %v863 = vadd.f32 %v862, 0.18741608
    %v864 = vmul.f32 %v855, %v863
    %v865 = vadd.f32 %v864, 1.1283791
    %v866 = vmul.f32 %v852, %v865
    %v867 = vmul.f32 %v855, 3.8918573e-05
    %v868 = vadd.f32 %v867, 0.001143296
    %v869 = vmul.f32 %v855, %v868
    %v870 = vadd.f32 %v869, 0.014752088
    %v871 = vmul.f32 %v855, %v870
    %v872 = vadd.f32 %v871, 0.112945676
    %v873 = vmul.f32 %v855, %v872
    %v874 = vadd.f32 %v873, 0.4994258
    %v875 = vmul.f32 %v855, %v874
    %v876 = vadd.f32 %v875, 1.0
    %v877 = vrcp.pop %v876
    %v878 = vmul.f32 %v876, %v877
    %v879 = vsub.f32 1.0, %v878
    %v880 = vmul.f32 %v877, %v879
    %v881 = vadd.f32 %v877, %v880
    %vm882 = vweird.f32 %v876
    %vm883 = vweird.f32 %v877
    %vm884 = vmor %vm882, %vm883
    %v885 = vsel %vm884, %v877, %v881
    %v886 = vand.u32 2147483647, %v876
    %vm887 = vcmp.eq.f32.partialorder %v886, 8.507059e+37
    %v888 = vand.u32 %v876, 2147483648
    %v889 = vor.u32 1.1754944e-38, %v888
    %v890 = vsel %vm887, %v889, %v885
    %v891 = vmul.f32 %v866, %v890
    %v892 = vmin.f32 %v891, 1.0
    %v893 = vmax.f32 %v892, -1.0
    %v894 = vmul.f32 %v853, %v853
    %v895 = vmin.f32 16.0, %v894
    %v896 = vmul.f32 %v895, 2.1237322e-06
    %v897 = vadd.f32 %v896, 0.00028619796
    %v898 = vmul.f32 %v895, %v897
    %v899 = vadd.f32 %v898, 0.0036580483
    %v900 = vmul.f32 %v895, %v899
    %v901 = vadd.f32 %v900, 0.05243302
    %v902 = vmul.f32 %v895, %v901
    %v903 = vadd.f32 %v902, 0.18741608
    %v904 = vmul.f32 %v895, %v903
    %v905 = vadd.f32 %v904, 1.1283791
    %v906 = vmul.f32 %v853, %v905
    %v907 = vmul.f32 %v895, 3.8918573e-05
    %v908 = vadd.f32 %v907, 0.001143296
    %v909 = vmul.f32 %v895, %v908
    %v910 = vadd.f32 %v909, 0.014752088
    %v911 = vmul.f32 %v895, %v910
    %v912 = vadd.f32 %v911, 0.112945676
    %v913 = vmul.f32 %v895, %v912
    %v914 = vadd.f32 %v913, 0.4994258
    %v915 = vmul.f32 %v895, %v914
    %v916 = vadd.f32 %v915, 1.0
    %v917 = vrcp.pop %v916
    %v918 = vmul.f32 %v916, %v917
    %v919 = vsub.f32 1.0, %v918
    %v920 = vmul.f32 %v917, %v919
    %v921 = vadd.f32 %v917, %v920
    %vm922 = vweird.f32 %v916
    %vm923 = vweird.f32 %v917
    %vm924 = vmor %vm922, %vm923
    %v925 = vsel %vm924, %v917, %v921
    %v926 = vand.u32 2147483647, %v916
    %vm927 = vcmp.eq.f32.partialorder %v926, 8.507059e+37
    %v928 = vand.u32 %v916, 2147483648
    %v929 = vor.u32 1.1754944e-38, %v928
    %v930 = vsel %vm927, %v929, %v925
    %v931 = vmul.f32 %v906, %v930
    %v932 = vmin.f32 %v931, 1.0
    %v933 = vmax.f32 %v932, -1.0
    %v934 = vadd.f32 %v893, 1.0
    %v935 = vadd.f32 %v933, 1.0
    %v936 = vmul.f32 %v850, %v934
    %v937 = vmul.f32 %v851, %v935
    %v938 = vld [vmem:[%s7] sm:$0xff]
    %v939 = vld [vmem:[%s7 + $0x8] sm:$0xff]
    %v940 = vld [vmem:[%s7 + $0x10] sm:$0xff]
    %v941 = vld [vmem:[%s7 + $0x18] sm:$0xff]
    %v942 = vld [vmem:[%s8] sm:$0x1]
    %v944 = vperm.slane %v942, 0
    %v947 = vsel %vm49, %v936, 0
    %v950 = vsel %vm49, %v937, 0
    %952 = vmatpush.msra.mxu0 0.0
    %953 = vmatpush.msra.mxu0 0.0
    %954 = vmatpush.msra.mxu0 0.0
    %955 = vmatpush.msra.mxu0 0.0
    %956 = vmatpush.msra.mxu0 0.0
    %957 = vmatpush.msra.mxu0 0.0
    %958 = vmatpush.msra.mxu0 0.0
    %959 = vmatpush.msra.mxu0 0.0
    %960 = vmatpush.msra.mxu0 0.0
    %961 = vmatpush.msra.mxu0 0.0
    %962 = vmatpush.msra.mxu0 0.0
    %963 = vmatpush.msra.mxu0 0.0
    %v964 = vand.u32 %v941, 4294901760
    %965 = vmatpush.msra.mxu0 %v964
    %v966 = vand.u32 %v940, 4294901760
    %967 = vmatpush.msra.mxu0 %v966
    %v968 = vand.u32 %v939, 4294901760
    %969 = vmatpush.msra.mxu0 %v968
    %v970 = vand.u32 %v938, 4294901760
    %971 = vmatpush.msra.mxu0 %v970
    %v972 = vand.u32 %v947, 4294901760
    %v973 = vsub.f32 %v947, %v972
    %v974 = vand.u32 %v973, 4294901760
    %v975 = vsub.f32 %v973, %v974
    %v976 = vand.u32 %v975, 4294901760
    %977 = vmatmul.f32.gmra.mxu0 %v976
    %v978 = vpop.f32.mrf.mxu0
    %v979 = vadd.f32 %v944, %v978
    %v980 = vand.u32 %v950, 4294901760
    %v981 = vsub.f32 %v950, %v980
    %v982 = vand.u32 %v981, 4294901760
    %v983 = vsub.f32 %v981, %v982
    %v984 = vand.u32 %v983, 4294901760
    %985 = vmatmul.f32.gmra.mxu0 %v984
    %v986 = vpop.f32.mrf.mxu0
    %v987 = vadd.f32 %v944, %v986
    %988 = vdwg.mxu0
    %989 = vmatpush.msra.mxu0 0.0
    %990 = vmatpush.msra.mxu0 0.0
    %991 = vmatpush.msra.mxu0 0.0
    %992 = vmatpush.msra.mxu0 0.0
    %993 = vmatpush.msra.mxu0 0.0
    %994 = vmatpush.msra.mxu0 0.0
    %995 = vmatpush.msra.mxu0 0.0
    %996 = vmatpush.msra.mxu0 0.0
    %997 = vmatpush.msra.mxu0 0.0
    %998 = vmatpush.msra.mxu0 0.0
    %999 = vmatpush.msra.mxu0 0.0
    %1000 = vmatpush.msra.mxu0 0.0
    %v1001 = vand.u32 %v941, 4294901760
    %v1002 = vsub.f32 %v941, %v1001
    %v1003 = vand.u32 %v1002, 4294901760
    %v1004 = vsub.f32 %v1002, %v1003
    %v1005 = vand.u32 %v1004, 4294901760
    %1006 = vmatpush.msra.mxu0 %v1005
    %v1007 = vand.u32 %v940, 4294901760
    %v1008 = vsub.f32 %v940, %v1007
    %v1009 = vand.u32 %v1008, 4294901760
    %v1010 = vsub.f32 %v1008, %v1009
    %v1011 = vand.u32 %v1010, 4294901760
    %1012 = vmatpush.msra.mxu0 %v1011
    %v1013 = vand.u32 %v939, 4294901760
    %v1014 = vsub.f32 %v939, %v1013
    %v1015 = vand.u32 %v1014, 4294901760
    %v1016 = vsub.f32 %v1014, %v1015
    %v1017 = vand.u32 %v1016, 4294901760
    %1018 = vmatpush.msra.mxu0 %v1017
    %v1019 = vand.u32 %v938, 4294901760
    %v1020 = vsub.f32 %v938, %v1019
    %v1021 = vand.u32 %v1020, 4294901760
    %v1022 = vsub.f32 %v1020, %v1021
    %v1023 = vand.u32 %v1022, 4294901760
    %1024 = vmatpush.msra.mxu0 %v1023
    %v1025 = vand.u32 %v947, 4294901760
    %1026 = vmatmul.f32.gmra.mxu0 %v1025
    %v1027 = vpop.f32.mrf.mxu0
    %v1028 = vadd.f32 %v979, %v1027
    %v1029 = vand.u32 %v950, 4294901760
    %1030 = vmatmul.f32.gmra.mxu0 %v1029
    %v1031 = vpop.f32.mrf.mxu0
    %v1032 = vadd.f32 %v987, %v1031
    %1033 = vdwg.mxu0
    %1034 = vmatpush.msra.mxu0 0.0
    %1035 = vmatpush.msra.mxu0 0.0
    %1036 = vmatpush.msra.mxu0 0.0
    %1037 = vmatpush.msra.mxu0 0.0
    %1038 = vmatpush.msra.mxu0 0.0
    %1039 = vmatpush.msra.mxu0 0.0
    %1040 = vmatpush.msra.mxu0 0.0
    %1041 = vmatpush.msra.mxu0 0.0
    %1042 = vmatpush.msra.mxu0 0.0
    %1043 = vmatpush.msra.mxu0 0.0
    %1044 = vmatpush.msra.mxu0 0.0
    %1045 = vmatpush.msra.mxu0 0.0
    %v1046 = vand.u32 %v941, 4294901760
    %v1047 = vsub.f32 %v941, %v1046
    %1048 = vmatpush.msra.mxu0 %v1047
    %v1049 = vand.u32 %v940, 4294901760
    %v1050 = vsub.f32 %v940, %v1049
    %1051 = vmatpush.msra.mxu0 %v1050
    %v1052 = vand.u32 %v939, 4294901760
    %v1053 = vsub.f32 %v939, %v1052
    %1054 = vmatpush.msra.mxu0 %v1053
    %v1055 = vand.u32 %v938, 4294901760
    %v1056 = vsub.f32 %v938, %v1055
    %1057 = vmatpush.msra.mxu0 %v1056
    %v1058 = vand.u32 %v947, 4294901760
    %v1059 = vsub.f32 %v947, %v1058
    %1060 = vmatmul.f32.gmra.mxu0 %v1059
    %v1061 = vpop.f32.mrf.mxu0
    %v1062 = vadd.f32 %v1028, %v1061
    %v1063 = vand.u32 %v950, 4294901760
    %v1064 = vsub.f32 %v950, %v1063
    %1065 = vmatmul.f32.gmra.mxu0 %v1064
    %v1066 = vpop.f32.mrf.mxu0
    %v1067 = vadd.f32 %v1032, %v1066
    %1068 = vdwg.mxu0
    %1069 = vmatpush.msra.mxu0 0.0
    %1070 = vmatpush.msra.mxu0 0.0
    %1071 = vmatpush.msra.mxu0 0.0
    %1072 = vmatpush.msra.mxu0 0.0
    %1073 = vmatpush.msra.mxu0 0.0
    %1074 = vmatpush.msra.mxu0 0.0
    %1075 = vmatpush.msra.mxu0 0.0
    %1076 = vmatpush.msra.mxu0 0.0
    %1077 = vmatpush.msra.mxu0 0.0
    %1078 = vmatpush.msra.mxu0 0.0
    %1079 = vmatpush.msra.mxu0 0.0
    %1080 = vmatpush.msra.mxu0 0.0
    %v1081 = vand.u32 %v941, 4294901760
    %1082 = vmatpush.msra.mxu0 %v1081
    %v1083 = vand.u32 %v940, 4294901760
    %1084 = vmatpush.msra.mxu0 %v1083
    %v1085 = vand.u32 %v939, 4294901760
    %1086 = vmatpush.msra.mxu0 %v1085
    %v1087 = vand.u32 %v938, 4294901760
    %1088 = vmatpush.msra.mxu0 %v1087
    %v1089 = vand.u32 %v947, 4294901760
    %v1090 = vsub.f32 %v947, %v1089
    %v1091 = vand.u32 %v1090, 4294901760
    %1092 = vmatmul.f32.gmra.mxu0 %v1091
    %v1093 = vpop.f32.mrf.mxu0
    %v1094 = vadd.f32 %v1062, %v1093
    %v1095 = vand.u32 %v950, 4294901760
    %v1096 = vsub.f32 %v950, %v1095
    %v1097 = vand.u32 %v1096, 4294901760
    %1098 = vmatmul.f32.gmra.mxu0 %v1097
    %v1099 = vpop.f32.mrf.mxu0
    %v1100 = vadd.f32 %v1067, %v1099
    %1101 = vdwg.mxu0
    %1102 = vmatpush.msra.mxu0 0.0
    %1103 = vmatpush.msra.mxu0 0.0
    %1104 = vmatpush.msra.mxu0 0.0
    %1105 = vmatpush.msra.mxu0 0.0
    %1106 = vmatpush.msra.mxu0 0.0
    %1107 = vmatpush.msra.mxu0 0.0
    %1108 = vmatpush.msra.mxu0 0.0
    %1109 = vmatpush.msra.mxu0 0.0
    %1110 = vmatpush.msra.mxu0 0.0
    %1111 = vmatpush.msra.mxu0 0.0
    %1112 = vmatpush.msra.mxu0 0.0
    %1113 = vmatpush.msra.mxu0 0.0
    %v1114 = vand.u32 %v941, 4294901760
    %v1115 = vsub.f32 %v941, %v1114
    %v1116 = vand.u32 %v1115, 4294901760
    %1117 = vmatpush.msra.mxu0 %v1116
    %v1118 = vand.u32 %v940, 4294901760
    %v1119 = vsub.f32 %v940, %v1118
    %v1120 = vand.u32 %v1119, 4294901760
    %1121 = vmatpush.msra.mxu0 %v1120
    %v1122 = vand.u32 %v939, 4294901760
    %v1123 = vsub.f32 %v939, %v1122
    %v1124 = vand.u32 %v1123, 4294901760
    %1125 = vmatpush.msra.mxu0 %v1124
    %v1126 = vand.u32 %v938, 4294901760
    %v1127 = vsub.f32 %v938, %v1126
    %v1128 = vand.u32 %v1127, 4294901760
    %1129 = vmatpush.msra.mxu0 %v1128
    %v1130 = vand.u32 %v947, 4294901760
    %1131 = vmatmul.f32.gmra.mxu0 %v1130
    %v1132 = vpop.f32.mrf.mxu0
    %v1133 = vadd.f32 %v1094, %v1132
    %v1134 = vand.u32 %v950, 4294901760
    %1135 = vmatmul.f32.gmra.mxu0 %v1134
    %v1136 = vpop.f32.mrf.mxu0
    %v1137 = vadd.f32 %v1100, %v1136
    %1138 = vdwg.mxu0
    %1139 = vmatpush.msra.mxu0 0.0
    %1140 = vmatpush.msra.mxu0 0.0
    %1141 = vmatpush.msra.mxu0 0.0
    %1142 = vmatpush.msra.mxu0 0.0
    %1143 = vmatpush.msra.mxu0 0.0
    %1144 = vmatpush.msra.mxu0 0.0
    %1145 = vmatpush.msra.mxu0 0.0
    %1146 = vmatpush.msra.mxu0 0.0
    %1147 = vmatpush.msra.mxu0 0.0
    %1148 = vmatpush.msra.mxu0 0.0
    %1149 = vmatpush.msra.mxu0 0.0
    %1150 = vmatpush.msra.mxu0 0.0
    %v1151 = vand.u32 %v941, 4294901760
    %1152 = vmatpush.msra.mxu0 %v1151
    %v1153 = vand.u32 %v940, 4294901760
    %1154 = vmatpush.msra.mxu0 %v1153
    %v1155 = vand.u32 %v939, 4294901760
    %1156 = vmatpush.msra.mxu0 %v1155
    %v1157 = vand.u32 %v938, 4294901760
    %1158 = vmatpush.msra.mxu0 %v1157
    %v1159 = vand.u32 %v947, 4294901760
    %1160 = vmatmul.f32.gmra.mxu0 %v1159
    %v1161 = vpop.f32.mrf.mxu0
    %v1162 = vadd.f32 %v1133, %v1161
    %v1163 = vand.u32 %v950, 4294901760
    %1164 = vmatmul.f32.gmra.mxu0 %v1163
    %v1165 = vpop.f32.mrf.mxu0
    %v1166 = vadd.f32 %v1137, %v1165
    %1167 = vdwg.mxu0
    %vm1168 = vcmask 31744
    %v1169 = vsel %vm1168, %v1162, 0.0
    %v1170 = vrot.slane %v1169, 4
    %v1171 = vadd.f32 %v1169, %v1170
    %v1172 = vrot.slane %v1171, 2
    %v1173 = vadd.f32 %v1171, %v1172
    %v1174 = vrot.slane %v1173, 1
    %v1175 = vadd.f32 %v1173, %v1174
    %v1176 = vsel %vm1168, %v1166, 0.0
    %v1177 = vrot.slane %v1176, 4
    %v1178 = vadd.f32 %v1176, %v1177
    %v1179 = vrot.slane %v1178, 2
    %v1180 = vadd.f32 %v1178, %v1179
    %v1181 = vrot.slane %v1180, 1
    %v1182 = vadd.f32 %v1180, %v1181
    %v1183 = vld [vmem:[#allocation2] sm:$0x3]
    %vm1186 = vcmask 1041409
    %v1187 = vsel %vm1186, %v1182, %v1175
    %v1189 = vadd.f32 %v1183, %v1187
    %vm1190 = vcmask 25600
    %1191 = vst.msk [vmem:[#allocation2] sm:$0x3] %vm1190, %v1189
    // Predicated region
    $region42: #{tpu_custom_call.1} parent=1 // pred_check
      %p1192 = pneg %p33
    $region43: #{tpu_custom_call.1} parent=1 // pred_check_branch
      %1194 = sbr.rel (%p1192) target = $region45
    $region44: #{tpu_custom_call.1} parent=1 // pred_region
      %v1195 = vld [vmem:[#allocation2] sm:$0x3]
      %v1196 = vmul.f32 %v1195, 0.125
      %v1197 = vsel %vm1190, %v1196, -inf
      %1198 = vmax.xlane.f32.xlu0 %v1197
      %v1199 = vpop.xlane.xlu0 %1198
      %v1200 = vsub.f32 %v1196, %v1199
      %v1201 = vmul.f32 %v1200, 1.442695
      %v1202 = vpow.pop %v1201
      %v1203 = vsel %vm1190, %v1202, 0.0
      %1204 = vadd.xlane.f32.xlu0 %v1203
      %v1205 = vpop.xlane.xlu0 %1204
      %v1206 = vrcp.pop %v1205
      %v1207 = vmul.f32 %v1205, %v1206
      %v1208 = vsub.f32 1.0, %v1207
      %v1209 = vmul.f32 %v1206, %v1208
      %v1210 = vadd.f32 %v1206, %v1209
      %vm1211 = vweird.f32 %v1205
      %vm1212 = vweird.f32 %v1206
      %vm1213 = vmor %vm1211, %vm1212
      %v1214 = vsel %vm1213, %v1206, %v1210
      %v1215 = vand.u32 2147483647, %v1205
      %vm1216 = vcmp.eq.f32.partialorder %v1215, 8.507059e+37
      %v1217 = vand.u32 %v1205, 2147483648
      %v1218 = vor.u32 1.1754944e-38, %v1217
      %v1219 = vsel %vm1216, %v1218, %v1214
      %v1220 = vmul.f32 %v1202, %v1219
      %1221 = vst.msk [vmem:[#allocation2] sm:$0x3] %vm1190, %v1220
    $region45: #{tpu_custom_call.1} parent=1 // pred_fallthru
      _
    // Predicated region
    $region46: #{tpu_custom_call.1} parent=1 // pred_check
      _
    $region47: #{tpu_custom_call.1} parent=1 // pred_check_branch
      %1223 = sbr.rel (0) target = $region49
    $region48: #{tpu_custom_call.1} parent=1 // pred_region
      %1225 = vsyncadd [#allocation3], 0
      %s1227 = sshll.u32 [#allocation2], 4
      %s1228 = int_to_ptr.vmem [resolvable:$true] %s1227
      %s1229 = sshll.u32 %s9, 4
      %s1230 = int_to_ptr.hbm [resolvable:$true] %s1229
      %1232 = dma.vmem_to_hbm [thread:$0]  %s1228, 32, %s1230, [#allocation3]
    $region49: #{tpu_custom_call.1} parent=1 // pred_fallthru
      _
    // Predicated region
    $region50: #{tpu_custom_call.1} parent=1 // pred_check
      _
    $region51: #{tpu_custom_call.1} parent=1 // pred_check_branch
      %1234 = sbr.rel (0) target = $region53
    $region52: #{tpu_custom_call.1} parent=1 // pred_region
      %1236 = dma.done [#allocation3], 32
    $region53: #{tpu_custom_call.1} parent=1 // pred_fallthru
      _
    %1237 = vsyncpa [#allocation3], 1

</llo_original>
